<compile_context>
chip_gen: v7x
topology: tpu7x:2x2x1
jax: 0.10.0
libtpu: 0.0.40
codegen_flags: <defaults>
</compile_context>

<pallas_src>
import jax
import jax.numpy as jnp
from jax.experimental import pallas as pl
from jax.experimental.pallas import tpu as pltpu


def _round_up(x, m):
    return (x + m - 1) // m * m


# ---------------------------------------------------------------------------
# Kernels
# ---------------------------------------------------------------------------

def _linear_kernel_nosplit(x_ref, w_ref, b_ref, o_ref):
    # Whole reduction in one step: no accumulator scratch, no pl.when phases.
    acc = jnp.dot(x_ref[...], w_ref[...], preferred_element_type=jnp.float32)
    o_ref[...] = (acc + b_ref[...]).astype(o_ref.dtype)


def _linear_kernel_ksplit(x_ref, w_ref, b_ref, o_ref, acc_ref):
    # Tiled reduction over the K grid axis with an f32 VMEM accumulator.
    k = pl.program_id(2)

    @pl.when(k == 0)
    def _():
        acc_ref[...] = jnp.zeros_like(acc_ref)

    acc_ref[...] += jnp.dot(x_ref[...], w_ref[...],
                            preferred_element_type=jnp.float32)

    @pl.when(k == pl.num_programs(2) - 1)
    def _():
        o_ref[...] = (acc_ref[...] + b_ref[...]).astype(o_ref.dtype)


# ---------------------------------------------------------------------------
# One-time parameter layout (init time, NOT per call)
# ---------------------------------------------------------------------------

def prepare_drying_linear_params(weight, bias, *, weight_dtype=None,
                                 max_weight_block_bytes=8 << 20):
    """One-time weight/bias layout for the Pallas forward pass.

    weight: [out_features, in_features]  (PyTorch nn.Linear convention)
    bias:   [out_features]

    Transposes the weight to [K, N] (padded to [Kp, Np] only when the layer is
    large enough to be tiled), reshapes the bias to f32 [1, Np], and chooses
    the N / K tile sizes the forward pass will use.  `weight_dtype=jnp.bfloat16`
    halves weight HBM traffic (the kernel keeps f32 accumulation); default
    keeps f32 to match PyTorch numerics exactly.
    """
    out_f, in_f = weight.shape
    assert bias.shape == (out_f,)

    w_t = jnp.asarray(weight).T                       # [K, N] — one-time transpose
    if weight_dtype is not None:
        w_t = w_t.astype(weight_dtype)
    b2d = jnp.asarray(bias, jnp.float32).reshape(1, out_f)
    itemsize = jnp.dtype(w_t.dtype).itemsize

    if out_f <= 256 and in_f <= 1024:
        # Small layer: the whole weight is a single VMEM block.  Full-array
        # block shapes are legal even when not (8,128)-aligned — no padding.
        tn, tk = out_f, in_f
    else:
        # N tile: lane-dense multiple of 128; >=256 fills a v6e/v7x MXU pass
        # and out_f>=512 yields >=2 N blocks so both v7x TensorCores get work.
        if out_f <= 256:
            tn = _round_up(out_f, 128)
        elif out_f <= 1024:
            tn = 256
        else:
            tn = 512
        Np = _round_up(out_f, tn)
        # K tile: take the entire reduction in one step when the [K, tn]
        # weight block fits the per-block budget (drops the K grid axis and
        # the accumulator); otherwise 256-aligned chunks of up to 1024.
        if in_f * tn * itemsize <= max_weight_block_bytes:
            tk = in_f
        else:
            tk = min(1024, max_weight_block_bytes // (tn * itemsize))
            tk = max(256, (tk // 256) * 256)
        Kp = _round_up(in_f, tk)
        if Np != out_f or Kp != in_f:
            w_t = jnp.pad(w_t, ((0, Kp - in_f), (0, Np - out_f)))
        if Np != out_f:
            b2d = jnp.pad(b2d, ((0, 0), (0, Np - out_f)))

    return {"w_t": w_t, "b": b2d,
            "out_features": out_f, "in_features": in_f,
            "tn": tn, "tk": tk}


# ---------------------------------------------------------------------------
# Forward pass
# ---------------------------------------------------------------------------

def drying_linear_forward(x, params, *, tm_cap=256,
                          vmem_limit_bytes=48 * 1024 * 1024):
    """y = x @ W^T + b using params pre-laid-out by prepare_drying_linear_params."""
    w_t, b2d = params["w_t"], params["b"]
    out_f, in_f = params["out_features"], params["in_features"]
    tn, tk = params["tn"], params["tk"]

    B, K = x.shape
    assert K == in_f, f"x feature dim {K} != layer in_features {in_f}"
    Kp, Np = w_t.shape

    # M tile: cover the whole batch with one block when it fits; tm_cap=256 is
    # a multiple of every sublane packing (8 f32 / 16 bf16 / 32 int8-fp8).
    if B <= tm_cap:
        tm, Bp = B, B                   # full-dim block: legal even if unaligned
    else:
        tm = tm_cap
        Bp = _round_up(B, tm)

    if Bp != B or Kp != K:
        # TODO(synk): avoid this per-call pad by aligning batch / in_features upstream.
        x = jnp.pad(x, ((0, Bp - B), (0, Kp - K)))

    m_blocks, n_blocks, k_blocks = Bp // tm, Np // tn, Kp // tk

    x_item = jnp.dtype(x.dtype).itemsize
    w_item = jnp.dtype(w_t.dtype).itemsize
    weight_reads = 1 if k_blocks == 1 else m_blocks
    cost = pl.CostEstimate(
        flops=2 * Bp * Kp * Np,
        bytes_accessed=(Bp * Kp * x_item * n_blocks
                        + Kp * Np * w_item * weight_reads
                        + Np * 4
                        + Bp * Np * x_item),
        transcendentals=0,
    )

    if k_blocks == 1:
        # Grid ordered (N, M): the weight block index only changes with the
        # outer axis, so each weight block is DMA'd once and reused across M.
        grid = (n_blocks, m_blocks)
        in_specs = [
            pl.BlockSpec((tm, tk), lambda j, i: (i, 0)),   # x tile
            pl.BlockSpec((tk, tn), lambda j, i: (0, j)),   # weight [K, N] tile
            pl.BlockSpec((1, tn), lambda j, i: (0, j)),    # bias tile
        ]
        out_specs = pl.BlockSpec((tm, tn), lambda j, i: (i, j))
        kernel = _linear_kernel_nosplit
        scratch_shapes = []
        dim_sem = ("parallel", "parallel")
    else:
        grid = (n_blocks, m_blocks, k_blocks)
        in_specs = [
            pl.BlockSpec((tm, tk), lambda j, i, k: (i, k)),
            pl.BlockSpec((tk, tn), lambda j, i, k: (k, j)),
            pl.BlockSpec((1, tn), lambda j, i, k: (0, j)),
        ]
        out_specs = pl.BlockSpec((tm, tn), lambda j, i, k: (i, j))
        kernel = _linear_kernel_ksplit
        scratch_shapes = [pltpu.VMEM((tm, tn), jnp.float32)]
        dim_sem = ("parallel", "parallel", "arbitrary")

    y = pl.pallas_call(
        kernel,
        out_shape=jax.ShapeDtypeStruct((Bp, Np), x.dtype),
        grid_spec=pltpu.PrefetchScalarGridSpec(
            num_scalar_prefetch=0,
            grid=grid,
            in_specs=in_specs,
            out_specs=out_specs,
            scratch_shapes=scratch_shapes,
        ),
        compiler_params=pltpu.CompilerParams(
            dimension_semantics=dim_sem,
            vmem_limit_bytes=vmem_limit_bytes,
        ),
        cost_estimate=cost,
    )(x, w_t, b2d)

    if Bp != B or Np != out_f:
        y = y[:B, :out_f]
    return y


# ---------------------------------------------------------------------------
# Demo / correctness checks
# ---------------------------------------------------------------------------

if __name__ == "__main__":
    key = jax.random.PRNGKey(0)

    def make_layer(layer_key, in_f, out_f, dry_ratio=0.1):
        kw, kb = jax.random.split(layer_key)
        bound = 1.0 / (in_f ** 0.5)
        weight = jax.random.uniform(kw, (out_f, in_f), minval=-bound,
                                    maxval=bound, dtype=jnp.float32)
        bias = jax.random.uniform(kb, (out_f,), minval=-bound,
                                  maxval=bound, dtype=jnp.float32)
        # dry_mask buffer kept for parity with the module; no forward effect.
        dry_count = int(out_f * dry_ratio)
        dry_mask = jnp.ones((out_f,), jnp.float32)
        if dry_count > 0:
            dry_mask = dry_mask.at[-dry_count:].set(0.0)
        dry_mask = dry_mask.reshape(-1, 1)
        # TODO(synk): _dry_hook is a backward-pass weight-decay hook; no forward equivalent.
        return weight, bias, dry_mask

    # --- production-like shape: batch=8, in=32, out=64 (single-block path) ----
    k1, k2, key = jax.random.split(key, 3)
    w_small, b_small, _ = make_layer(k1, 32, 64)
    params_small = prepare_drying_linear_params(w_small, b_small)
    x_small = jax.random.normal(k2, (8, 32), dtype=jnp.float32)
    y_small = drying_linear_forward(x_small, params_small)
    jax.block_until_ready(y_small)
    ref_small = x_small @ w_small.T + b_small
    assert y_small.shape == ref_small.shape, "shape mismatch vs reference"
    assert jnp.allclose(y_small, ref_small, atol=5e-3, rtol=5e-3), \
        "small-shape mismatch vs reference"

    # --- tiled path, single K step, 2 N blocks (weight streamed once) ---------
    k3, k4, key = jax.random.split(key, 3)
    w_mid, b_mid, _ = make_layer(k3, 512, 512)
    params_mid = prepare_drying_linear_params(w_mid, b_mid)
    x_mid = jax.random.normal(k4, (16, 512), dtype=jnp.float32)
    y_mid = drying_linear_forward(x_mid, params_mid)
    jax.block_until_ready(y_mid)
    ref_mid = x_mid @ w_mid.T + b_mid
    assert jnp.allclose(y_mid, ref_mid, atol=2e-2, rtol=2e-2), \
        "tiled (no-split) mismatch vs reference"

    # --- tiled path with a split K axis (accumulator kernel) ------------------
    params_split = prepare_drying_linear_params(
        w_mid, b_mid, max_weight_block_bytes=256 * 256 * 4)
    y_split = drying_linear_forward(x_mid, params_split)
    jax.block_until_ready(y_split)
    assert jnp.allclose(y_split, ref_mid, atol=2e-2, rtol=2e-2), \
        "tiled (K-split) mismatch vs reference"

    print("KERNEL_OK")
</pallas_src>

<mosaic_0001>
module attributes {stable_mosaic.version = 11 : i64} {
  func.func @_linear_kernel_nosplit(%arg0: i32, %arg1: i32, %arg2: memref<8x32xf32, #tpu.memory_space<vmem>>, %arg3: memref<32x64xf32, #tpu.memory_space<vmem>>, %arg4: memref<1x64xf32, #tpu.memory_space<vmem>>, %arg5: memref<8x64xf32, #tpu.memory_space<vmem>>) attributes {dimension_semantics = [#tpu.dimension_semantics<parallel>, #tpu.dimension_semantics<parallel>], iteration_bounds = array<i64: 1, 1>, scalar_prefetch = 0 : i64, scratch_operands = 0 : i64, tpu.core_type = #tpu.core_type<tc>, window_params = [{transform_indices = @transform_0, window_bounds = array<i64: 8, 32>}, {transform_indices = @transform_1, window_bounds = array<i64: 32, 64>}, {transform_indices = @transform_2, window_bounds = array<i64: 1, 64>}, {transform_indices = @transform_3, window_bounds = array<i64: 8, 64>}]} {
    %c0 = arith.constant 0 : index
    %c0_0 = arith.constant 0 : index
    %0 = vector.load %arg2[%c0, %c0_0] : memref<8x32xf32, #tpu.memory_space<vmem>>, vector<8x32xf32>
    %c0_1 = arith.constant 0 : index
    %c0_2 = arith.constant 0 : index
    %1 = vector.load %arg3[%c0_1, %c0_2] : memref<32x64xf32, #tpu.memory_space<vmem>>, vector<32x64xf32>
    %cst = arith.constant dense<0.000000e+00> : vector<8x64xf32>
    %2 = tpu.matmul %0, %1, %cst {dimension_numbers = #tpu.dot_dimension_numbers<[1], [0], [0], [1], [0, 0, 1, 1], [], []>} : vector<8x32xf32>, vector<32x64xf32>, vector<8x64xf32> -> vector<8x64xf32>
    %c0_3 = arith.constant 0 : index
    %c0_4 = arith.constant 0 : index
    %3 = vector.load %arg4[%c0_3, %c0_4] : memref<1x64xf32, #tpu.memory_space<vmem>>, vector<1x64xf32>
    %4 = vector.broadcast %3 : vector<1x64xf32> to vector<8x64xf32>
    %5 = arith.addf %2, %4 : vector<8x64xf32>
    %c0_5 = arith.constant 0 : index
    %c0_6 = arith.constant 0 : index
    %6 = vector.load %arg5[%c0_5, %c0_6] : memref<8x64xf32, #tpu.memory_space<vmem>>, vector<8x64xf32>
    tpu.vector_store %arg5[%c0_5, %c0_6], %5 {strides = array<i32>} : memref<8x64xf32, #tpu.memory_space<vmem>>, vector<8x64xf32>,
    return
  }
  func.func @transform_0(%arg0: i32, %arg1: i32) -> (i32, i32) {
    %c0_i32 = arith.constant 0 : i32
    %c0_i32_0 = arith.constant 0 : i32
    return %arg1, %c0_i32 : i32, i32
  }
  func.func @transform_1(%arg0: i32, %arg1: i32) -> (i32, i32) {
    %c0_i32 = arith.constant 0 : i32
    %c0_i32_0 = arith.constant 0 : i32
    return %c0_i32, %arg0 : i32, i32
  }
  func.func @transform_2(%arg0: i32, %arg1: i32) -> (i32, i32) {
    %c0_i32 = arith.constant 0 : i32
    %c0_i32_0 = arith.constant 0 : i32
    return %c0_i32, %arg0 : i32, i32
  }
  func.func @transform_3(%arg0: i32, %arg1: i32) -> (i32, i32) {
    %c0_i32 = arith.constant 0 : i32
    return %arg1, %arg0 : i32, i32
  }
}

</mosaic_0001>

<llo_original>
// kernel: tpu_custom_call.1
$region0: #{tpu_custom_call.1}
  #allocation0 [shape = 'u32[]', space=smem, size = 0x4, offset = 0x4, fixed_abs, tag = 'smem constant byte address 0x4 - core index']
  #allocation1 [shape = 'u32[144,128]{1,0:T(1,128)}', space=vmem, size = 0x12000, scoped, tag = 'internal scratch']
  %s0 = inlined_call_operand.hbm [shape: f32[8,32], index: 0, kind: input, shape index: {}]
  %s1 = inlined_call_operand.hbm [shape: f32[32,64], index: 1, kind: input, shape index: {}]
  %s2 = inlined_call_operand.vmem [shape: f32[1,64], index: 2, kind: input, shape index: {}]
  %s3 = inlined_call_operand.hbm [shape: f32[8,64], index: 3, kind: output, shape index: {}]
  %s4 = sld [smem:[#allocation0]]
  $region30: #{tpu_custom_call.1} parent=0
    _
  %s6 = ssub.s32 1, %s4
  %s7 = scalar_select 0, %s6, %s4
  $region1: #{tpu_custom_call.1} parent=0
    #allocation2 [shape = 'u8[4096]{0}', space=vmem, size = 0x1000, scoped, tag = 'input window, operand 0, single buffered']
    #allocation3 [shape = 's32[1]{0}', space=sflag, size = 0x4, scoped, tag = 'scoped memory for tpu_custom_call.1']
    #allocation4 [shape = 's32[1]{0}', space=sflag, size = 0x4, scoped, tag = 'scoped memory for tpu_custom_call.1']
    #allocation5 [shape = 'u8[16384]{0}', space=vmem, size = 0x4000, scoped, tag = 'input window, operand 1, single buffered']
    #allocation6 [shape = 's32[1]{0}', space=sflag, size = 0x4, scoped, tag = 'scoped memory for tpu_custom_call.1']
    #allocation7 [shape = 'u8[4096]{0}', space=vmem, size = 0x1000, scoped, tag = 'output window, operand 0, single buffered']
    %8 = vsyncpa [#allocation3], 0
    %9 = vsyncpa [#allocation6], 0
    %10 = vsyncpa [#allocation4], 0
    // Predicated region
    $region2: #{tpu_custom_call.1} parent=1 // pred_check
      _
    $region3: #{tpu_custom_call.1} parent=1 // pred_check_branch
      %12 = sbr.rel (0) target = $region5
    $region4: #{tpu_custom_call.1} parent=1 // pred_region
      %s14 = ssub.s32 128, 128
      %15 = vsyncadd [#allocation3], %s14
      %s17 = sshll.u32 [#allocation2], 4
      %s18 = int_to_ptr.vmem [resolvable:$true] %s17
      %20 = dma.hbm_to_vmem [thread:$0]  %s0, 128, %s18, [#allocation3]
    $region5: #{tpu_custom_call.1} parent=1 // pred_fallthru
      _
    // Predicated region
    $region6: #{tpu_custom_call.1} parent=1 // pred_check
      _
    $region7: #{tpu_custom_call.1} parent=1 // pred_check_branch
      %22 = sbr.rel (0) target = $region9
    $region8: #{tpu_custom_call.1} parent=1 // pred_region
      %s24 = ssub.s32 512, 512
      %25 = vsyncadd [#allocation6], %s24
      %s26 = sshll.u32 [#allocation5], 4
      %s27 = int_to_ptr.vmem [resolvable:$true] %s26
      %32 = dma.hbm_to_vmem [thread:$0]  %s1, 512, %s27, [#allocation6], 128, 128, 8
    $region9: #{tpu_custom_call.1} parent=1 // pred_fallthru
      _
    // Predicated region
    $region10: #{tpu_custom_call.1} parent=1 // pred_check
      _
    $region11: #{tpu_custom_call.1} parent=1 // pred_check_branch
      %34 = sbr.rel (0) target = $region13
    $region12: #{tpu_custom_call.1} parent=1 // pred_region
      _
    $region13: #{tpu_custom_call.1} parent=1 // pred_fallthru
      _
    // Predicated region
    $region14: #{tpu_custom_call.1} parent=1 // pred_check
      _
    $region15: #{tpu_custom_call.1} parent=1 // pred_check_branch
      %36 = sbr.rel (0) target = $region17
    $region16: #{tpu_custom_call.1} parent=1 // pred_region
      %37 = dma.done [#allocation3], 128
    $region17: #{tpu_custom_call.1} parent=1 // pred_fallthru
      _
    // Predicated region
    $region18: #{tpu_custom_call.1} parent=1 // pred_check
      _
    $region19: #{tpu_custom_call.1} parent=1 // pred_check_branch
      %39 = sbr.rel (0) target = $region21
    $region20: #{tpu_custom_call.1} parent=1 // pred_region
      %40 = dma.done [#allocation6], 512
    $region21: #{tpu_custom_call.1} parent=1 // pred_fallthru
      _
    %v41 = vld [vmem:[#allocation2] sm:$0xff]
    %v42 = vld [vmem:[#allocation5] sm:$0xff]
    %v43 = vld [vmem:[#allocation5 + $0x8] sm:$0xff]
    %v44 = vld [vmem:[#allocation5 + $0x10] sm:$0xff]
    %v45 = vld [vmem:[#allocation5 + $0x18] sm:$0xff]
    %v46 = vld [vmem:[%s2] sm:$0x1]
    %v48 = vlaneseq
    %v49 = vshrl.u32 %v48, 7
    %v50 = vsub.s32 0, %v49
    %v51 = vrot.slane %v46, %v50
    %vm53 = vcmask 261120
    %v55 = vsel %vm53, %v41, 0
    %57 = vmatprep.subr.mxu0 0.0
    %58 = vmatpush1.msra.mxu0 %v42
    %59 = vmatprep.subr.mxu0 0.0
    %60 = vmatpush1.msra.mxu0 %v43
    %61 = vmatprep.subr.mxu0 0.0
    %62 = vmatpush1.msra.mxu0 %v44
    %63 = vmatprep.subr.mxu0 0.0
    %64 = vmatpush1.msra.mxu0 %v45
    %65 = vmatprep.subr.mxu0 0.0
    %66 = vmatpush1.msra.mxu0 0.0
    %67 = vmatprep.subr.mxu0 0.0
    %68 = vmatpush1.msra.mxu0 0.0
    %69 = vmatprep.subr.mxu0 0.0
    %70 = vmatpush1.msra.mxu0 0.0
    %71 = vmatprep.subr.mxu0 0.0
    %72 = vmatpush1.msra.mxu0 0.0
    %73 = vmatprep.subr.mxu0 0.0
    %74 = vmatpush1.msra.mxu0 0.0
    %75 = vmatprep.subr.mxu0 0.0
    %76 = vmatpush1.msra.mxu0 0.0
    %77 = vmatprep.subr.mxu0 0.0
    %78 = vmatpush1.msra.mxu0 0.0
    %79 = vmatprep.subr.mxu0 0.0
    %80 = vmatpush1.msra.mxu0 0.0
    %81 = vmatprep.subr.mxu0 0.0
    %82 = vmatpush1.msra.mxu0 0.0
    %83 = vmatprep.subr.mxu0 0.0
    %84 = vmatpush1.msra.mxu0 0.0
    %85 = vmatprep.subr.mxu0 0.0
    %86 = vmatpush1.msra.mxu0 0.0
    %87 = vmatprep.subr.mxu0 0.0
    %88 = vmatpush1.msra.mxu0 0.0
    %89 = vmatprep.subr.mxu0 0.0
    %90 = vmatpush1.msra.mxu0 0.0
    %91 = vmatprep.subr.mxu0 0.0
    %92 = vmatpush1.msra.mxu0 0.0
    %93 = vmatprep.subr.mxu0 0.0
    %94 = vmatpush1.msra.mxu0 0.0
    %95 = vmatprep.subr.mxu0 0.0
    %96 = vmatpush1.msra.mxu0 0.0
    %97 = vmatprep.subr.mxu0 0.0
    %98 = vmatpush1.msra.mxu0 0.0
    %99 = vmatprep.subr.mxu0 0.0
    %100 = vmatpush1.msra.mxu0 0.0
    %101 = vmatprep.subr.mxu0 0.0
    %102 = vmatpush1.msra.mxu0 0.0
    %103 = vmatprep.subr.mxu0 0.0
    %104 = vmatpush1.msra.mxu0 0.0
    %105 = vmatprep.subr.mxu0 0.0
    %106 = vmatpush1.msra.mxu0 0.0
    %107 = vmatprep.subr.mxu0 0.0
    %108 = vmatpush1.msra.mxu0 0.0
    %109 = vmatprep.subr.mxu0 0.0
    %110 = vmatpush1.msra.mxu0 0.0
    %111 = vmatprep.subr.mxu0 0.0
    %112 = vmatpush1.msra.mxu0 0.0
    %113 = vmatprep.subr.mxu0 0.0
    %114 = vmatpush1.msra.mxu0 0.0
    %115 = vmatprep.subr.mxu0 0.0
    %116 = vmatpush1.msra.mxu0 0.0
    %117 = vmatprep.subr.mxu0 0.0
    %118 = vmatpush1.msra.mxu0 0.0
    %119 = vmatprep.subr.mxu0 0.0
    %120 = vmatpush1.msra.mxu0 0.0
    %121 = vmatprep.mubr.f32.mxu0 0.0
    %122 = vmatmul.mubr.f32.gmra.mrb[0].mxu0 %v55
    %v123 = vpop.f32.mrb[0].mxu0
    %v124 = vadd.f32 %v51, %v123
    %v125 = vpop.f32.mrb[0].mxu0
    %126 = vdwg.mxu0
    %vm127 = vcmask 523264
    %128 = vst.msk [vmem:[#allocation7] sm:$0xff] %vm127, %v124
    // Predicated region
    $region22: #{tpu_custom_call.1} parent=1 // pred_check
      _
    $region23: #{tpu_custom_call.1} parent=1 // pred_check_branch
      %130 = sbr.rel (0) target = $region25
    $region24: #{tpu_custom_call.1} parent=1 // pred_region
      %s132 = ssub.s32 128, 128
      %133 = vsyncadd [#allocation4], %s132
      %s135 = sshll.u32 [#allocation7], 4
      %s136 = int_to_ptr.vmem [resolvable:$true] %s135
      %138 = dma.vmem_to_hbm [thread:$0]  %s136, 128, %s3, [#allocation4]
    $region25: #{tpu_custom_call.1} parent=1 // pred_fallthru
      _
    // Predicated region
    $region26: #{tpu_custom_call.1} parent=1 // pred_check
      _
    $region27: #{tpu_custom_call.1} parent=1 // pred_check_branch
      %140 = sbr.rel (0) target = $region29
    $region28: #{tpu_custom_call.1} parent=1 // pred_region
      %141 = dma.done [#allocation4], 128
    $region29: #{tpu_custom_call.1} parent=1 // pred_fallthru
      _
    %142 = vsyncpa [#allocation3], 1
    %143 = vsyncpa [#allocation6], 1
    %144 = vsyncpa [#allocation4], 1

</llo_original>
